<compile_context>
chip_gen: v6e
topology: v6e:2x2x1
jax: 0.10.0
libtpu: 0.0.40
codegen_flags: <defaults>
</compile_context>

<pallas_src>
import jax
import jax.numpy as jnp
from jax.experimental import pallas as pl
from jax.experimental.pallas import tpu as pltpu


def _z_loc_kernel(x_ref, o_ref, *, inv_t):
    # x_ref / o_ref: (rows_tile, T).  Each row is one (b, c) slice of x; the
    # mean is taken along the lane axis (T) independently per row, so padded
    # rows in a partial last block cannot corrupt valid rows.
    x = x_ref[...]
    mu = jnp.sum(x, axis=-1, keepdims=True) * inv_t   # lane reduce + const mul
    d = x - mu
    o_ref[...] = jnp.exp(-(d * d))                    # one EUP op per element


def z_loc_forward(x, *, max_tile_bytes=4 * 1024 * 1024):
    """x: (B, C, T) -> exp(-(x - mean(x, axis=2, keepdims=True))**2)."""
    B, C, T = x.shape
    R = B * C
    x2 = x.reshape(R, T)

    # Row-tile sizing: biggest sublane-aligned tile under the VMEM budget.
    bytes_per_row = T * x2.dtype.itemsize
    rows_fit = max(1, max_tile_bytes // bytes_per_row)
    if rows_fit >= R:
        rt = R                                 # whole array in a single block
    else:
        rt = max(8, (rows_fit // 8) * 8)       # multiple of 8 sublanes

    grid = (pl.cdiv(R, rt),)
    inv_t = 1.0 / float(T)                     # trace-time constant, no divide

    out2 = pl.pallas_call(
        lambda x_ref, o_ref: _z_loc_kernel(x_ref, o_ref, inv_t=inv_t),
        out_shape=jax.ShapeDtypeStruct((R, T), x2.dtype),
        grid_spec=pltpu.PrefetchScalarGridSpec(
            num_scalar_prefetch=0,
            grid=grid,
            in_specs=[pl.BlockSpec((rt, T), lambda r: (r, 0))],
            out_specs=pl.BlockSpec((rt, T), lambda r: (r, 0)),
        ),
        compiler_params=pltpu.CompilerParams(
            dimension_semantics=("parallel",),
            vmem_limit_bytes=32 * 1024 * 1024,
        ),
    )(x2)

    return out2.reshape(B, C, T)


if __name__ == "__main__":
    # Small, deterministic example consistent with the module's forward:
    # x is (batch, channels, positions); mean is taken over dim 2.
    B, C, T = 2, 16, 128

    key = jax.random.PRNGKey(0)
    x = jax.random.normal(key, (B, C, T), dtype=jnp.float32)

    out = jax.block_until_ready(z_loc_forward(x))

    # Reference (plain JAX, mirrors the PyTorch broadcasting).
    ref = jnp.exp(-((x - x.mean(axis=2, keepdims=True)) ** 2))
    assert out.shape == (B, C, T)
    assert jnp.allclose(out, ref, atol=1e-6, rtol=1e-6)

    print("KERNEL_OK")
</pallas_src>

<mosaic_0001>
module attributes {stable_mosaic.version = 11 : i64} {
  func.func @_lambda_(%arg0: i32, %arg1: memref<32x128xf32, #tpu.memory_space<vmem>>, %arg2: memref<32x128xf32, #tpu.memory_space<vmem>>) attributes {dimension_semantics = [#tpu.dimension_semantics<parallel>], iteration_bounds = array<i64: 1>, scalar_prefetch = 0 : i64, scratch_operands = 0 : i64, tpu.core_type = #tpu.core_type<tc>, window_params = [{transform_indices = @transform_0, window_bounds = array<i64: 32, 128>}, {transform_indices = @transform_1, window_bounds = array<i64: 32, 128>}]} {
    %c0 = arith.constant 0 : index
    %c0_0 = arith.constant 0 : index
    %0 = vector.load %arg1[%c0, %c0_0] : memref<32x128xf32, #tpu.memory_space<vmem>>, vector<32x128xf32>
    %cst = arith.constant dense<0.000000e+00> : vector<32xf32>
    %1 = vector.multi_reduction <add>, %0, %cst [1] : vector<32x128xf32> to vector<32xf32>
    %2 = vector.shape_cast %1 : vector<32xf32> to vector<32x1xf32>
    %cst_1 = arith.constant 7.812500e-03 : f32
    %3 = vector.broadcast %cst_1 : f32 to vector<32x1xf32>
    %4 = arith.mulf %2, %3 : vector<32x1xf32>
    %5 = vector.broadcast %4 : vector<32x1xf32> to vector<32x128xf32>
    %6 = arith.subf %0, %5 : vector<32x128xf32>
    %7 = arith.mulf %6, %6 : vector<32x128xf32>
    %cst_2 = arith.constant 0.000000e+00 : f32
    %8 = vector.broadcast %cst_2 : f32 to vector<32x128xf32>
    %9 = arith.subf %8, %7 : vector<32x128xf32>
    %10 = math.exp %9 : vector<32x128xf32>
    %c0_3 = arith.constant 0 : index
    %c0_4 = arith.constant 0 : index
    %11 = vector.load %arg2[%c0_3, %c0_4] : memref<32x128xf32, #tpu.memory_space<vmem>>, vector<32x128xf32>
    tpu.vector_store %arg2[%c0_3, %c0_4], %10 {strides = array<i32>} : memref<32x128xf32, #tpu.memory_space<vmem>>, vector<32x128xf32>,
    return
  }
  func.func @transform_0(%arg0: i32) -> (i32, i32) {
    %c0_i32 = arith.constant 0 : i32
    %c0_i32_0 = arith.constant 0 : i32
    return %arg0, %c0_i32 : i32, i32
  }
  func.func @transform_1(%arg0: i32) -> (i32, i32) {
    %c0_i32 = arith.constant 0 : i32
    %c0_i32_0 = arith.constant 0 : i32
    return %arg0, %c0_i32 : i32, i32
  }
}

</mosaic_0001>

<llo_original>
// kernel: tpu_custom_call.1
$region0: #{tpu_custom_call.1}
  #allocation0 [shape = 'u32[]', space=smem, size = 0x4, offset = 0x4, fixed_abs, tag = 'smem constant byte address 0x4 - core index']
  #allocation1 [shape = 'u32[144,128]{1,0:T(1,128)}', space=vmem, size = 0x12000, scoped, tag = 'internal scratch']
  %s0 = inlined_call_operand.hbm [shape: f32[32,128], index: 0, kind: input, shape index: {}]
  %s1 = inlined_call_operand.hbm [shape: f32[32,128], index: 1, kind: output, shape index: {}]
  %s2 = sld [smem:[#allocation0]]
  $region18: #{tpu_custom_call.1} parent=0
    _
  %s4 = ssub.s32 1, %s2
  %s5 = scalar_select 0, %s4, %s2
  $region1: #{tpu_custom_call.1} parent=0
    #allocation2 [shape = 'u8[16384]{0}', space=vmem, size = 0x4000, scoped, tag = 'input window, operand 0, single buffered']
    #allocation3 [shape = 's32[1]{0}', space=sflag, size = 0x4, scoped, tag = 'scoped memory for tpu_custom_call.1']
    #allocation4 [shape = 's32[1]{0}', space=sflag, size = 0x4, scoped, tag = 'scoped memory for tpu_custom_call.1']
    #allocation5 [shape = 'u8[16384]{0}', space=vmem, size = 0x4000, scoped, tag = 'output window, operand 0, single buffered']
    %6 = vsyncpa [#allocation3], 0
    %7 = vsyncpa [#allocation4], 0
    // Predicated region
    $region2: #{tpu_custom_call.1} parent=1 // pred_check
      _
    $region3: #{tpu_custom_call.1} parent=1 // pred_check_branch
      %9 = sbr.rel (0) target = $region5
    $region4: #{tpu_custom_call.1} parent=1 // pred_region
      %s11 = ssub.s32 512, 512
      %12 = vsyncadd [#allocation3], %s11
      %s13 = sshll.u32 [#allocation2], 4
      %s14 = int_to_ptr.vmem [resolvable:$true] %s13
      %19 = dma.hbm_to_vmem [thread:$0]  %s0, 512, %s14, [#allocation3], 128, 128, 8
    $region5: #{tpu_custom_call.1} parent=1 // pred_fallthru
      _
    // Predicated region
    $region6: #{tpu_custom_call.1} parent=1 // pred_check
      _
    $region7: #{tpu_custom_call.1} parent=1 // pred_check_branch
      %21 = sbr.rel (0) target = $region9
    $region8: #{tpu_custom_call.1} parent=1 // pred_region
      %22 = dma.done [#allocation3], 512
    $region9: #{tpu_custom_call.1} parent=1 // pred_fallthru
      _
    %v23 = vld [vmem:[#allocation2] sm:$0xff]
    %v24 = vld [vmem:[#allocation2 + $0x8] sm:$0xff]
    %v25 = vld [vmem:[#allocation2 + $0x10] sm:$0xff]
    %v26 = vld [vmem:[#allocation2 + $0x18] sm:$0xff]
    %27 = vadd.xlane.f32.xlu0 %v23
    %v28 = vpop.xlane.xlu0 %27
    %29 = vadd.xlane.f32.xlu0 %v24
    %v30 = vpop.xlane.xlu0 %29
    %31 = vadd.xlane.f32.xlu0 %v25
    %v32 = vpop.xlane.xlu0 %31
    %33 = vadd.xlane.f32.xlu0 %v26
    %v34 = vpop.xlane.xlu0 %33
    %v35 = vmul.f32 %v28, 0.0078125
    %v36 = vmul.f32 %v30, 0.0078125
    %v37 = vmul.f32 %v32, 0.0078125
    %v38 = vmul.f32 %v34, 0.0078125
    %v39 = vsub.f32 %v23, %v35
    %v40 = vsub.f32 %v24, %v36
    %v41 = vsub.f32 %v25, %v37
    %v42 = vsub.f32 %v26, %v38
    %v43 = vmul.f32 %v39, %v39
    %v44 = vmul.f32 %v40, %v40
    %v45 = vmul.f32 %v41, %v41
    %v46 = vmul.f32 %v42, %v42
    %v47 = vsub.f32 0.0, %v43
    %v48 = vsub.f32 0.0, %v44
    %v49 = vsub.f32 0.0, %v45
    %v50 = vsub.f32 0.0, %v46
    %v51 = vmul.f32 %v47, 1.442695
    %v52 = vpow.pop %v51
    %v53 = vmul.f32 %v48, 1.442695
    %v54 = vpow.pop %v53
    %v55 = vmul.f32 %v49, 1.442695
    %v56 = vpow.pop %v55
    %v57 = vmul.f32 %v50, 1.442695
    %v58 = vpow.pop %v57
    %59 = vst [vmem:[#allocation5] sm:$0xff] %v52
    %60 = vst [vmem:[#allocation5 + $0x8] sm:$0xff] %v54
    %61 = vst [vmem:[#allocation5 + $0x10] sm:$0xff] %v56
    %62 = vst [vmem:[#allocation5 + $0x18] sm:$0xff] %v58
    // Predicated region
    $region10: #{tpu_custom_call.1} parent=1 // pred_check
      _
    $region11: #{tpu_custom_call.1} parent=1 // pred_check_branch
      %64 = sbr.rel (0) target = $region13
    $region12: #{tpu_custom_call.1} parent=1 // pred_region
      %s66 = ssub.s32 512, 512
      %67 = vsyncadd [#allocation4], %s66
      %s68 = sshll.u32 [#allocation5], 4
      %s69 = int_to_ptr.vmem [resolvable:$true] %s68
      %74 = dma.vmem_to_hbm [thread:$0]  %s69, 512, %s1, [#allocation4], 128, 128, 8
    $region13: #{tpu_custom_call.1} parent=1 // pred_fallthru
      _
    // Predicated region
    $region14: #{tpu_custom_call.1} parent=1 // pred_check
      _
    $region15: #{tpu_custom_call.1} parent=1 // pred_check_branch
      %76 = sbr.rel (0) target = $region17
    $region16: #{tpu_custom_call.1} parent=1 // pred_region
      %77 = dma.done [#allocation4], 512
    $region17: #{tpu_custom_call.1} parent=1 // pred_fallthru
      _
    %78 = vsyncpa [#allocation3], 1
    %79 = vsyncpa [#allocation4], 1

</llo_original>
